<compile_context>
chip_gen: v5e
topology: v5e:2x2
jax: 0.10.0
libtpu: 0.0.40
codegen_flags: <defaults>
</compile_context>

<pallas_src>
import functools
import math

import jax
import jax.numpy as jnp
from jax.experimental import pallas as pl
from jax.experimental.pallas import tpu as pltpu


# ----------------------------------------------------------------------------
# Tiled linear kernel:  y = x @ W_t + b      (W_t pre-transposed to [K, N])
# ----------------------------------------------------------------------------
def _linear_kernel(x_ref, w_ref, b_ref, o_ref):
    y = jnp.dot(x_ref[...], w_ref[...], preferred_element_type=jnp.float32)
    o_ref[...] = (y + b_ref[...]).astype(o_ref.dtype)


def linear(x, w_t, b, *, tile_m=256):
    """x: [M, K]; w_t: [K, N] (already transposed); b: [N]."""
    M, K = x.shape
    N = w_t.shape[1]
    tm = M if M <= tile_m else tile_m
    return pl.pallas_call(
        _linear_kernel,
        out_shape=jax.ShapeDtypeStruct((M, N), x.dtype),
        grid=(pl.cdiv(M, tm),),
        in_specs=[
            pl.BlockSpec((tm, K), lambda i: (i, 0)),
            pl.BlockSpec((K, N), lambda i: (0, 0)),
            pl.BlockSpec((1, N), lambda i: (0, 0)),
        ],
        out_specs=pl.BlockSpec((tm, N), lambda i: (i, 0)),
        compiler_params=pltpu.CompilerParams(
            dimension_semantics=("parallel",)),
    )(x, w_t, b[None, :])


# ----------------------------------------------------------------------------
# Fused Q/K/V projection: one pallas_call, three matmuls per row tile.
# (query/key/value are distinct inputs, so a single [D,3D] weight fusion does
#  not apply; fusing the three projections into one launch does.)
# ----------------------------------------------------------------------------
def _qkv_kernel(xq_ref, xk_ref, xv_ref,
                wq_ref, wk_ref, wv_ref,
                bq_ref, bk_ref, bv_ref,
                q_ref, k_ref, v_ref):
    q_ref[...] = (jnp.dot(xq_ref[...], wq_ref[...],
                          preferred_element_type=jnp.float32)
                  + bq_ref[...]).astype(q_ref.dtype)
    k_ref[...] = (jnp.dot(xk_ref[...], wk_ref[...],
                          preferred_element_type=jnp.float32)
                  + bk_ref[...]).astype(k_ref.dtype)
    v_ref[...] = (jnp.dot(xv_ref[...], wv_ref[...],
                          preferred_element_type=jnp.float32)
                  + bv_ref[...]).astype(v_ref.dtype)


def qkv_projection(xq, xk, xv, wq_t, wk_t, wv_t, bq, bk, bv, *, tile_m=256):
    M, K = xq.shape
    N = wq_t.shape[1]
    tm = M if M <= tile_m else tile_m
    x_spec = pl.BlockSpec((tm, K), lambda i: (i, 0))
    w_spec = pl.BlockSpec((K, N), lambda i: (0, 0))
    b_spec = pl.BlockSpec((1, N), lambda i: (0, 0))
    o_spec = pl.BlockSpec((tm, N), lambda i: (i, 0))
    out_sd = jax.ShapeDtypeStruct((M, N), xq.dtype)
    return pl.pallas_call(
        _qkv_kernel,
        out_shape=(out_sd, out_sd, out_sd),
        grid=(pl.cdiv(M, tm),),
        in_specs=[x_spec, x_spec, x_spec,
                  w_spec, w_spec, w_spec,
                  b_spec, b_spec, b_spec],
        out_specs=(o_spec, o_spec, o_spec),
        compiler_params=pltpu.CompilerParams(
            dimension_semantics=("parallel",)),
    )(xq, xk, xv, wq_t, wk_t, wv_t, bq[None, :], bk[None, :], bv[None, :])


# ----------------------------------------------------------------------------
# Attention core kernel.
# Grid: (batch, query-tile).  Per program: all heads, one query tile.
#   q: [H, Tq, Dh]   k, v: [H, S, Dh]   e_proj: [2R+1, Dh]
# ----------------------------------------------------------------------------
def _attn_kernel(q_ref, k_ref, v_ref, e_ref,
                 o_ref, attn_ref, cs_ref, ps_ref,
                 *, max_rel_dist, inv_scale):
    q = q_ref[0]                      # [H, Tq, Dh]
    k = k_ref[0]                      # [H, S,  Dh]
    v = v_ref[0]                      # [H, S,  Dh]
    e = e_ref[...]                    # [2R+1, Dh]

    H, Tq, Dh = q.shape
    S = k.shape[1]
    R = max_rel_dist
    n_rel = 2 * R + 1

    # content[h, l, m] = sum_d q[h, l, d] * k[h, m, d]   (MXU, no K transpose)
    content = jax.lax.dot_general(
        q, k,
        dimension_numbers=(((2,), (2,)), ((0,), (0,))),
        preferred_element_type=jnp.float32)               # [H, Tq, S]

    # Shaw factorization: P[h, l, j] = sum_d q[h, l, d] * E_proj[j, d]  (MXU)
    e_b = jnp.broadcast_to(e[None, :, :], (H, n_rel, Dh))
    p_rel = jax.lax.dot_general(
        q, e_b,
        dimension_numbers=(((2,), (2,)), ((0,), (0,))),
        preferred_element_type=jnp.float32)               # [H, Tq, 2R+1]

    # Expand P -> pos[h, l, r] = P[h, l, clip(r - l, -R, R) + R]  (banded select)
    q_start = pl.program_id(1) * Tq
    row = jax.lax.broadcasted_iota(jnp.int32, (Tq, S), 0) + q_start
    col = jax.lax.broadcasted_iota(jnp.int32, (Tq, S), 1)
    idx = jnp.clip(col - row, -R, R) + R                  # [Tq, S]

    pos = jnp.zeros((H, Tq, S), jnp.float32)
    for j in range(n_rel):
        pos = pos + jnp.where(idx[None, :, :] == j, p_rel[:, :, j:j + 1], 0.0)

    # Scaled, max-stabilized softmax (scores returned unscaled, per module).
    score = (content + pos) * inv_scale
    m = jnp.max(score, axis=-1, keepdims=True)
    p = jnp.exp(score - m)
    denom = jnp.sum(p, axis=-1, keepdims=True)
    attn = p * pl.reciprocal(denom, approx=False)

    ctx = jax.lax.dot_general(
        attn.astype(v.dtype), v,
        dimension_numbers=(((2,), (1,)), ((0,), (0,))),
        preferred_element_type=jnp.float32)               # [H, Tq, Dh]

    o_ref[0] = ctx.astype(o_ref.dtype)
    attn_ref[0] = attn.astype(attn_ref.dtype)
    cs_ref[0] = content.astype(cs_ref.dtype)
    ps_ref[0] = pos.astype(ps_ref.dtype)


def attention_core(q, k, v, e_proj, max_rel_dist, inv_scale, *, tile_q=256):
    """q, k, v: [B, H, S, Dh]; e_proj: [2R+1, Dh]."""
    B, H, S, Dh = q.shape
    n_rel = e_proj.shape[0]
    tq = S if S <= tile_q else tile_q
    kernel = functools.partial(
        _attn_kernel, max_rel_dist=max_rel_dist, inv_scale=inv_scale)
    out_shapes = (
        jax.ShapeDtypeStruct((B, H, S, Dh), q.dtype),      # context
        jax.ShapeDtypeStruct((B, H, S, S), jnp.float32),   # attn
        jax.ShapeDtypeStruct((B, H, S, S), jnp.float32),   # content_score
        jax.ShapeDtypeStruct((B, H, S, S), jnp.float32),   # pos_score
    )
    return pl.pallas_call(
        kernel,
        out_shape=out_shapes,
        grid=(B, pl.cdiv(S, tq)),
        in_specs=[
            pl.BlockSpec((1, H, tq, Dh), lambda b, i: (b, 0, i, 0)),
            pl.BlockSpec((1, H, S, Dh), lambda b, i: (b, 0, 0, 0)),
            pl.BlockSpec((1, H, S, Dh), lambda b, i: (b, 0, 0, 0)),
            pl.BlockSpec((n_rel, Dh), lambda b, i: (0, 0)),
        ],
        out_specs=(
            pl.BlockSpec((1, H, tq, Dh), lambda b, i: (b, 0, i, 0)),
            pl.BlockSpec((1, H, tq, S), lambda b, i: (b, 0, i, 0)),
            pl.BlockSpec((1, H, tq, S), lambda b, i: (b, 0, i, 0)),
            pl.BlockSpec((1, H, tq, S), lambda b, i: (b, 0, i, 0)),
        ),
        compiler_params=pltpu.CompilerParams(
            dimension_semantics=("parallel", "parallel")),
    )(q, k, v, e_proj)


# ----------------------------------------------------------------------------
# Parameter prep: transpose nn.Linear weights ONCE (not per call).
# ----------------------------------------------------------------------------
def prepare_params(params):
    return {
        "wq_t": params["wq"].T, "bq": params["bq"],
        "wk_t": params["wk"].T, "bk": params["bk"],
        "wv_t": params["wv"].T, "bv": params["bv"],
        "wo_t": params["wo"].T, "bo": params["bo"],
        "wp_t": params["wp"].T, "bp": params["bp"],
    }


# ----------------------------------------------------------------------------
# RelAttShaw forward (Pallas-backed)
# ----------------------------------------------------------------------------
def rel_att_shaw_forward(prepared, query, key, value, pos_emb_table,
                         heads, max_rel_dist):
    B, S, D = query.shape
    Dh = D // heads
    inv_scale = 1.0 / math.sqrt(D)   # module scales by sqrt(d_model)

    # Fused q/k/v projections (one pallas_call, tiled/pipelined over rows).
    q2, k2, v2 = qkv_projection(
        query.reshape(B * S, D), key.reshape(B * S, D), value.reshape(B * S, D),
        prepared["wq_t"], prepared["wk_t"], prepared["wv_t"],
        prepared["bq"], prepared["bk"], prepared["bv"])

    # TODO(synk): head split/merge transposes remain XLA layout glue.
    q = q2.reshape(B, S, heads, Dh).transpose(0, 2, 1, 3)   # [B,H,S,Dh]
    k = k2.reshape(B, S, heads, Dh).transpose(0, 2, 1, 3)   # [B,H,S,Dh]
    v = v2.reshape(B, S, heads, Dh).transpose(0, 2, 1, 3)   # [B,H,S,Dh]

    # pos_proj applied to the tiny (2R+1, Dh) table (commutes with the gather).
    e_proj = linear(pos_emb_table, prepared["wp_t"], prepared["bp"])

    ctx, attn, content_score, pos_score = attention_core(
        q, k, v, e_proj, max_rel_dist, inv_scale)

    out = ctx.transpose(0, 2, 1, 3).reshape(B * S, D)
    out = linear(out, prepared["wo_t"], prepared["bo"]).reshape(B, S, D)
    # TODO(synk): nn.Dropout(p=0.0) is identity and is omitted.
    return out, attn, content_score, pos_score


# ----------------------------------------------------------------------------
# Pure-JAX reference (literal translation of the PyTorch module)
# ----------------------------------------------------------------------------
def rel_att_shaw_reference(params, query, key, value, pos_emb_table,
                           heads, max_rel_dist):
    B, S, D = query.shape
    Dh = D // heads
    dim_scale = math.sqrt(D)

    def lin(x, w, b):
        return x @ w.T + b

    q = lin(query, params["wq"], params["bq"]).reshape(B, S, heads, Dh).transpose(0, 2, 1, 3)
    k = lin(key, params["wk"], params["bk"]).reshape(B, S, heads, Dh).transpose(0, 2, 3, 1)
    v = lin(value, params["wv"], params["bv"]).reshape(B, S, heads, Dh).transpose(0, 2, 1, 3)

    seq = jnp.arange(S)
    rel_dist = jnp.clip(seq[None, :] - seq[:, None],
                        -max_rel_dist, max_rel_dist) + max_rel_dist
    rel = lin(pos_emb_table[rel_dist], params["wp"], params["bp"])

    pos_score = jnp.einsum('bhld,lrd->bhlr', q, rel)
    content_score = jnp.matmul(q, k)
    score = (content_score + pos_score) / dim_scale
    attn = jax.nn.softmax(score, axis=-1)
    out = jnp.matmul(attn, v).transpose(0, 2, 1, 3).reshape(B, S, D)
    out = lin(out, params["wo"], params["bo"])
    return out, attn, content_score, pos_score


# ----------------------------------------------------------------------------
if __name__ == "__main__":
    B, S, D, H = 2, 8, 32, 4
    Dh = D // H
    MAX_REL = 7   # 2*MAX_REL + 1 == 2*S - 1, matching the module's convention

    key0 = jax.random.PRNGKey(0)
    keys = jax.random.split(key0, 16)

    def init(k, shape, scale=0.05):
        return (scale * jax.random.normal(k, shape)).astype(jnp.float32)

    params = {
        "wq": init(keys[0], (D, D)), "bq": init(keys[1], (D,)),
        "wk": init(keys[2], (D, D)), "bk": init(keys[3], (D,)),
        "wv": init(keys[4], (D, D)), "bv": init(keys[5], (D,)),
        "wo": init(keys[6], (D, D)), "bo": init(keys[7], (D,)),
        "wp": init(keys[8], (Dh, Dh)), "bp": init(keys[9], (Dh,)),
    }
    pos_emb_table = init(keys[10], (2 * MAX_REL + 1, Dh), scale=1.0)

    query = init(keys[11], (B, S, D), scale=1.0)
    key_t = init(keys[12], (B, S, D), scale=1.0)
    value = init(keys[13], (B, S, D), scale=1.0)

    prepared = prepare_params(params)

    outs = rel_att_shaw_forward(prepared, query, key_t, value, pos_emb_table,
                                heads=H, max_rel_dist=MAX_REL)
    outs = jax.block_until_ready(outs)

    refs = rel_att_shaw_reference(params, query, key_t, value, pos_emb_table,
                                  heads=H, max_rel_dist=MAX_REL)
    names = ("out", "attn", "content_score", "pos_score")
    for name, o, r in zip(names, outs, refs):
        assert o.shape == r.shape, (name, o.shape, r.shape)
        assert jnp.allclose(o, r, atol=1e-4, rtol=1e-4), name

    print("KERNEL_OK")
</pallas_src>

<mosaic_0001>
module attributes {stable_mosaic.version = 11 : i64} {
  func.func @_qkv_kernel(%arg0: i32, %arg1: memref<16x32xf32, #tpu.memory_space<vmem>>, %arg2: memref<16x32xf32, #tpu.memory_space<vmem>>, %arg3: memref<16x32xf32, #tpu.memory_space<vmem>>, %arg4: memref<32x32xf32, #tpu.memory_space<vmem>>, %arg5: memref<32x32xf32, #tpu.memory_space<vmem>>, %arg6: memref<32x32xf32, #tpu.memory_space<vmem>>, %arg7: memref<1x32xf32, #tpu.memory_space<vmem>>, %arg8: memref<1x32xf32, #tpu.memory_space<vmem>>, %arg9: memref<1x32xf32, #tpu.memory_space<vmem>>, %arg10: memref<16x32xf32, #tpu.memory_space<vmem>>, %arg11: memref<16x32xf32, #tpu.memory_space<vmem>>, %arg12: memref<16x32xf32, #tpu.memory_space<vmem>>) attributes {dimension_semantics = [#tpu.dimension_semantics<parallel>], iteration_bounds = array<i64: 1>, scalar_prefetch = 0 : i64, scratch_operands = 0 : i64, tpu.core_type = #tpu.core_type<tc>, window_params = [{transform_indices = @transform_0, window_bounds = array<i64: 16, 32>}, {transform_indices = @transform_1, window_bounds = array<i64: 16, 32>}, {transform_indices = @transform_2, window_bounds = array<i64: 16, 32>}, {pipeline_mode = #tpu.pipeline_mode<synchronous>, transform_indices = @transform_3, window_bounds = array<i64: 32, 32>}, {pipeline_mode = #tpu.pipeline_mode<synchronous>, transform_indices = @transform_4, window_bounds = array<i64: 32, 32>}, {pipeline_mode = #tpu.pipeline_mode<synchronous>, transform_indices = @transform_5, window_bounds = array<i64: 32, 32>}, {pipeline_mode = #tpu.pipeline_mode<synchronous>, transform_indices = @transform_6, window_bounds = array<i64: 1, 32>}, {pipeline_mode = #tpu.pipeline_mode<synchronous>, transform_indices = @transform_7, window_bounds = array<i64: 1, 32>}, {pipeline_mode = #tpu.pipeline_mode<synchronous>, transform_indices = @transform_8, window_bounds = array<i64: 1, 32>}, {transform_indices = @transform_9, window_bounds = array<i64: 16, 32>}, {transform_indices = @transform_10, window_bounds = array<i64: 16, 32>}, {transform_indices = @transform_11, window_bounds = array<i64: 16, 32>}]} {
    %c0 = arith.constant 0 : index
    %c0_0 = arith.constant 0 : index
    %0 = vector.load %arg1[%c0, %c0_0] : memref<16x32xf32, #tpu.memory_space<vmem>>, vector<16x32xf32>
    %c0_1 = arith.constant 0 : index
    %c0_2 = arith.constant 0 : index
    %1 = vector.load %arg4[%c0_1, %c0_2] : memref<32x32xf32, #tpu.memory_space<vmem>>, vector<32x32xf32>
    %cst = arith.constant dense<0.000000e+00> : vector<16x32xf32>
    %2 = tpu.matmul %0, %1, %cst {dimension_numbers = #tpu.dot_dimension_numbers<[1], [0], [0], [1], [0, 0, 1, 1], [], []>} : vector<16x32xf32>, vector<32x32xf32>, vector<16x32xf32> -> vector<16x32xf32>
    %c0_3 = arith.constant 0 : index
    %c0_4 = arith.constant 0 : index
    %3 = vector.load %arg7[%c0_3, %c0_4] : memref<1x32xf32, #tpu.memory_space<vmem>>, vector<1x32xf32>
    %4 = vector.broadcast %3 : vector<1x32xf32> to vector<16x32xf32>
    %5 = arith.addf %2, %4 : vector<16x32xf32>
    %c0_5 = arith.constant 0 : index
    %c0_6 = arith.constant 0 : index
    %6 = vector.load %arg10[%c0_5, %c0_6] : memref<16x32xf32, #tpu.memory_space<vmem>>, vector<16x32xf32>
    tpu.vector_store %arg10[%c0_5, %c0_6], %5 {strides = array<i32>} : memref<16x32xf32, #tpu.memory_space<vmem>>, vector<16x32xf32>,
    %c0_7 = arith.constant 0 : index
    %c0_8 = arith.constant 0 : index
    %7 = vector.load %arg2[%c0_7, %c0_8] : memref<16x32xf32, #tpu.memory_space<vmem>>, vector<16x32xf32>
    %c0_9 = arith.constant 0 : index
    %c0_10 = arith.constant 0 : index
    %8 = vector.load %arg5[%c0_9, %c0_10] : memref<32x32xf32, #tpu.memory_space<vmem>>, vector<32x32xf32>
    %cst_11 = arith.constant dense<0.000000e+00> : vector<16x32xf32>
    %9 = tpu.matmul %7, %8, %cst_11 {dimension_numbers = #tpu.dot_dimension_numbers<[1], [0], [0], [1], [0, 0, 1, 1], [], []>} : vector<16x32xf32>, vector<32x32xf32>, vector<16x32xf32> -> vector<16x32xf32>
    %c0_12 = arith.constant 0 : index
    %c0_13 = arith.constant 0 : index
    %10 = vector.load %arg8[%c0_12, %c0_13] : memref<1x32xf32, #tpu.memory_space<vmem>>, vector<1x32xf32>
    %11 = vector.broadcast %10 : vector<1x32xf32> to vector<16x32xf32>
    %12 = arith.addf %9, %11 : vector<16x32xf32>
    %c0_14 = arith.constant 0 : index
    %c0_15 = arith.constant 0 : index
    %13 = vector.load %arg11[%c0_14, %c0_15] : memref<16x32xf32, #tpu.memory_space<vmem>>, vector<16x32xf32>
    tpu.vector_store %arg11[%c0_14, %c0_15], %12 {strides = array<i32>} : memref<16x32xf32, #tpu.memory_space<vmem>>, vector<16x32xf32>,
    %c0_16 = arith.constant 0 : index
    %c0_17 = arith.constant 0 : index
    %14 = vector.load %arg3[%c0_16, %c0_17] : memref<16x32xf32, #tpu.memory_space<vmem>>, vector<16x32xf32>
    %c0_18 = arith.constant 0 : index
    %c0_19 = arith.constant 0 : index
    %15 = vector.load %arg6[%c0_18, %c0_19] : memref<32x32xf32, #tpu.memory_space<vmem>>, vector<32x32xf32>
    %cst_20 = arith.constant dense<0.000000e+00> : vector<16x32xf32>
    %16 = tpu.matmul %14, %15, %cst_20 {dimension_numbers = #tpu.dot_dimension_numbers<[1], [0], [0], [1], [0, 0, 1, 1], [], []>} : vector<16x32xf32>, vector<32x32xf32>, vector<16x32xf32> -> vector<16x32xf32>
    %c0_21 = arith.constant 0 : index
    %c0_22 = arith.constant 0 : index
    %17 = vector.load %arg9[%c0_21, %c0_22] : memref<1x32xf32, #tpu.memory_space<vmem>>, vector<1x32xf32>
    %18 = vector.broadcast %17 : vector<1x32xf32> to vector<16x32xf32>
    %19 = arith.addf %16, %18 : vector<16x32xf32>
    %c0_23 = arith.constant 0 : index
    %c0_24 = arith.constant 0 : index
    %20 = vector.load %arg12[%c0_23, %c0_24] : memref<16x32xf32, #tpu.memory_space<vmem>>, vector<16x32xf32>
    tpu.vector_store %arg12[%c0_23, %c0_24], %19 {strides = array<i32>} : memref<16x32xf32, #tpu.memory_space<vmem>>, vector<16x32xf32>,
    return
  }
  func.func @transform_0(%arg0: i32) -> (i32, i32) {
    %c0_i32 = arith.constant 0 : i32
    %c0_i32_0 = arith.constant 0 : i32
    return %arg0, %c0_i32 : i32, i32
  }
  func.func @transform_1(%arg0: i32) -> (i32, i32) {
    %c0_i32 = arith.constant 0 : i32
    %c0_i32_0 = arith.constant 0 : i32
    return %arg0, %c0_i32 : i32, i32
  }
  func.func @transform_2(%arg0: i32) -> (i32, i32) {
    %c0_i32 = arith.constant 0 : i32
    %c0_i32_0 = arith.constant 0 : i32
    return %arg0, %c0_i32 : i32, i32
  }
  func.func @transform_3(%arg0: i32) -> (i32, i32) {
    %c0_i32 = arith.constant 0 : i32
    %c0_i32_0 = arith.constant 0 : i32
    %c0_i32_1 = arith.constant 0 : i32
    return %c0_i32, %c0_i32_0 : i32, i32
  }
  func.func @transform_4(%arg0: i32) -> (i32, i32) {
    %c0_i32 = arith.constant 0 : i32
    %c0_i32_0 = arith.constant 0 : i32
    %c0_i32_1 = arith.constant 0 : i32
    return %c0_i32, %c0_i32_0 : i32, i32
  }
  func.func @transform_5(%arg0: i32) -> (i32, i32) {
    %c0_i32 = arith.constant 0 : i32
    %c0_i32_0 = arith.constant 0 : i32
    %c0_i32_1 = arith.constant 0 : i32
    return %c0_i32, %c0_i32_0 : i32, i32
  }
  func.func @transform_6(%arg0: i32) -> (i32, i32) {
    %c0_i32 = arith.constant 0 : i32
    %c0_i32_0 = arith.constant 0 : i32
    %c0_i32_1 = arith.constant 0 : i32
    return %c0_i32, %c0_i32_0 : i32, i32
  }
  func.func @transform_7(%arg0: i32) -> (i32, i32) {
    %c0_i32 = arith.constant 0 : i32
    %c0_i32_0 = arith.constant 0 : i32
    %c0_i32_1 = arith.constant 0 : i32
    return %c0_i32, %c0_i32_0 : i32, i32
  }
  func.func @transform_8(%arg0: i32) -> (i32, i32) {
    %c0_i32 = arith.constant 0 : i32
    %c0_i32_0 = arith.constant 0 : i32
    %c0_i32_1 = arith.constant 0 : i32
    return %c0_i32, %c0_i32_0 : i32, i32
  }
  func.func @transform_9(%arg0: i32) -> (i32, i32) {
    %c0_i32 = arith.constant 0 : i32
    %c0_i32_0 = arith.constant 0 : i32
    return %arg0, %c0_i32 : i32, i32
  }
  func.func @transform_10(%arg0: i32) -> (i32, i32) {
    %c0_i32 = arith.constant 0 : i32
    %c0_i32_0 = arith.constant 0 : i32
    return %arg0, %c0_i32 : i32, i32
  }
  func.func @transform_11(%arg0: i32) -> (i32, i32) {
    %c0_i32 = arith.constant 0 : i32
    %c0_i32_0 = arith.constant 0 : i32
    return %arg0, %c0_i32 : i32, i32
  }
}

</mosaic_0001>

<llo_original>
// kernel: tpu_custom_call.1
$region0: #{tpu_custom_call.1}
  #allocation0 [shape = 'u32[]', space=smem, size = 0x4, offset = 0x4, fixed_abs, tag = 'smem constant byte address 0x4 - core index']
  #allocation1 [shape = 'u32[72,128]{1,0:T(1,128)}', space=vmem, size = 0x9000, scoped, tag = 'internal scratch']
  %s0 = inlined_call_operand.hbm [shape: f32[16,32], index: 0, kind: input, shape index: {}]
  %s1 = inlined_call_operand.hbm [shape: f32[16,32], index: 1, kind: input, shape index: {}]
  %s2 = inlined_call_operand.hbm [shape: f32[16,32], index: 2, kind: input, shape index: {}]
  %s3 = inlined_call_operand.hbm [shape: f32[32,32], index: 3, kind: input, shape index: {}]
  %s4 = inlined_call_operand.hbm [shape: f32[32,32], index: 4, kind: input, shape index: {}]
  %s5 = inlined_call_operand.hbm [shape: f32[32,32], index: 5, kind: input, shape index: {}]
  %s6 = inlined_call_operand.vmem [shape: f32[1,32], index: 6, kind: input, shape index: {}]
  %s7 = inlined_call_operand.vmem [shape: f32[1,32], index: 7, kind: input, shape index: {}]
  %s8 = inlined_call_operand.vmem [shape: f32[1,32], index: 8, kind: input, shape index: {}]
  %s9 = inlined_call_operand.hbm [shape: f32[16,32], index: 9, kind: output, shape index: {0}]
  %s10 = inlined_call_operand.hbm [shape: f32[16,32], index: 10, kind: output, shape index: {1}]
  %s11 = inlined_call_operand.hbm [shape: f32[16,32], index: 11, kind: output, shape index: {2}]
  %12 = xla_tuple %s9, %s10, %s11
  %s13 = sld [smem:[#allocation0]]
  $region86: #{tpu_custom_call.1} parent=0
    _
  %s15 = ssub.s32 1, %s13
  %s16 = scalar_select 0, %s15, %s13
  $region1: #{tpu_custom_call.1} parent=0
    #allocation2 [shape = 'u8[8192]{0}', space=vmem, size = 0x2000, scoped, tag = 'input window, operand 0, single buffered']
    #allocation3 [shape = 's32[1]{0}', space=sflag, size = 0x4, scoped, tag = 'scoped memory for tpu_custom_call.1']
    #allocation4 [shape = 's32[1]{0}', space=sflag, size = 0x4, scoped, tag = 'scoped memory for tpu_custom_call.1']
    #allocation5 [shape = 'u8[8192]{0}', space=vmem, size = 0x2000, scoped, tag = 'input window, operand 1, single buffered']
    #allocation6 [shape = 's32[1]{0}', space=sflag, size = 0x4, scoped, tag = 'scoped memory for tpu_custom_call.1']
    #allocation7 [shape = 'u8[8192]{0}', space=vmem, size = 0x2000, scoped, tag = 'input window, operand 2, single buffered']
    #allocation8 [shape = 'u8[16384]{0}', space=vmem, size = 0x4000, scoped, tag = 'input window, operand 3, single buffered']
    #allocation9 [shape = 's32[1]{0}', space=sflag, size = 0x4, scoped, tag = 'scoped memory for tpu_custom_call.1']
    #allocation10 [shape = 'u8[16384]{0}', space=vmem, size = 0x4000, scoped, tag = 'input window, operand 4, single buffered']
    #allocation11 [shape = 'u8[16384]{0}', space=vmem, size = 0x4000, scoped, tag = 'input window, operand 5, single buffered']
    #allocation12 [shape = 's32[1]{0}', space=sflag, size = 0x4, scoped, tag = 'scoped memory for tpu_custom_call.1']
    #allocation13 [shape = 'u8[8192]{0}', space=vmem, size = 0x2000, scoped, tag = 'output window, operand 0, single buffered']
    #allocation14 [shape = 'u8[8192]{0}', space=vmem, size = 0x2000, scoped, tag = 'output window, operand 1, single buffered']
    #allocation15 [shape = 's32[1]{0}', space=sflag, size = 0x4, scoped, tag = 'scoped memory for tpu_custom_call.1']
    #allocation16 [shape = 'u8[8192]{0}', space=vmem, size = 0x2000, scoped, tag = 'output window, operand 2, single buffered']
    %17 = vsyncpa [#allocation3], 0
    %18 = vsyncpa [#allocation6], 0
    %19 = vsyncpa [#allocation9], 0
    %20 = vsyncpa [#allocation12], 0
    %21 = vsyncpa [#allocation4], 0
    %22 = vsyncpa [#allocation15], 0
    // Predicated region
    $region2: #{tpu_custom_call.1} parent=1 // pred_check
      _
    $region3: #{tpu_custom_call.1} parent=1 // pred_check_branch
      %24 = sbr.rel (0) target = $region5
    $region4: #{tpu_custom_call.1} parent=1 // pred_region
      %26 = vsyncadd [#allocation3], 0
      %s27 = sshll.u32 %s0, 4
      %s28 = int_to_ptr.hbm [resolvable:$true] %s27
      %s29 = sshll.u32 [#allocation2], 4
      %s30 = int_to_ptr.vmem [resolvable:$true] %s29
      %35 = dma.hbm_to_vmem [thread:$0]  %s28, 256, %s30, [#allocation3], 128, 128, 8
    $region5: #{tpu_custom_call.1} parent=1 // pred_fallthru
      _
    // Predicated region
    $region6: #{tpu_custom_call.1} parent=1 // pred_check
      _
    $region7: #{tpu_custom_call.1} parent=1 // pred_check_branch
      %37 = sbr.rel (0) target = $region9
    $region8: #{tpu_custom_call.1} parent=1 // pred_region
      %39 = vsyncadd [#allocation6], 0
      %s40 = sshll.u32 %s1, 4
      %s41 = int_to_ptr.hbm [resolvable:$true] %s40
      %s42 = sshll.u32 [#allocation5], 4
      %s43 = int_to_ptr.vmem [resolvable:$true] %s42
      %48 = dma.hbm_to_vmem [thread:$0]  %s41, 256, %s43, [#allocation6], 128, 128, 8
    $region9: #{tpu_custom_call.1} parent=1 // pred_fallthru
      _
    // Predicated region
    $region10: #{tpu_custom_call.1} parent=1 // pred_check
      _
    $region11: #{tpu_custom_call.1} parent=1 // pred_check_branch
      %50 = sbr.rel (0) target = $region13
    $region12: #{tpu_custom_call.1} parent=1 // pred_region
      %52 = vsyncadd [#allocation6], 0
      %s53 = sshll.u32 %s2, 4
      %s54 = int_to_ptr.hbm [resolvable:$true] %s53
      %s55 = sshll.u32 [#allocation7], 4
      %s56 = int_to_ptr.vmem [resolvable:$true] %s55
      %61 = dma.hbm_to_vmem [thread:$0]  %s54, 256, %s56, [#allocation6], 128, 128, 8
    $region13: #{tpu_custom_call.1} parent=1 // pred_fallthru
      _
    // Predicated region
    $region14: #{tpu_custom_call.1} parent=1 // pred_check
      _
    $region15: #{tpu_custom_call.1} parent=1 // pred_check_branch
      %63 = sbr.rel (0) target = $region17
    $region16: #{tpu_custom_call.1} parent=1 // pred_region
      %65 = vsyncadd [#allocation9], 0
      %s66 = sshll.u32 %s3, 4
      %s67 = int_to_ptr.hbm [resolvable:$true] %s66
      %s68 = sshll.u32 [#allocation8], 4
      %s69 = int_to_ptr.vmem [resolvable:$true] %s68
      %74 = dma.hbm_to_vmem [thread:$0]  %s67, 512, %s69, [#allocation9], 128, 128, 8
    $region17: #{tpu_custom_call.1} parent=1 // pred_fallthru
      _
    // Predicated region
    $region18: #{tpu_custom_call.1} parent=1 // pred_check
      _
    $region19: #{tpu_custom_call.1} parent=1 // pred_check_branch
      %76 = sbr.rel (0) target = $region21
    $region20: #{tpu_custom_call.1} parent=1 // pred_region
      %78 = vsyncadd [#allocation9], 0
      %s79 = sshll.u32 %s4, 4
      %s80 = int_to_ptr.hbm [resolvable:$true] %s79
      %s81 = sshll.u32 [#allocation10], 4
      %s82 = int_to_ptr.vmem [resolvable:$true] %s81
      %87 = dma.hbm_to_vmem [thread:$0]  %s80, 512, %s82, [#allocation9], 128, 128, 8
    $region21: #{tpu_custom_call.1} parent=1 // pred_fallthru
      _
    // Predicated region
    $region22: #{tpu_custom_call.1} parent=1 // pred_check
      _
    $region23: #{tpu_custom_call.1} parent=1 // pred_check_branch
      %89 = sbr.rel (0) target = $region25
    $region24: #{tpu_custom_call.1} parent=1 // pred_region
      %91 = vsyncadd [#allocation12], 0
      %s92 = sshll.u32 %s5, 4
      %s93 = int_to_ptr.hbm [resolvable:$true] %s92
      %s94 = sshll.u32 [#allocation11], 4
      %s95 = int_to_ptr.vmem [resolvable:$true] %s94
      %100 = dma.hbm_to_vmem [thread:$0]  %s93, 512, %s95, [#allocation12], 128, 128, 8
    $region25: #{tpu_custom_call.1} parent=1 // pred_fallthru
      _
    // Predicated region
    $region26: #{tpu_custom_call.1} parent=1 // pred_check
      _
    $region27: #{tpu_custom_call.1} parent=1 // pred_check_branch
      %102 = sbr.rel (0) target = $region29
    $region28: #{tpu_custom_call.1} parent=1 // pred_region
      _
    $region29: #{tpu_custom_call.1} parent=1 // pred_fallthru
      _
    // Predicated region
    $region30: #{tpu_custom_call.1} parent=1 // pred_check
      _
    $region31: #{tpu_custom_call.1} parent=1 // pred_check_branch
      %104 = sbr.rel (0) target = $region33
    $region32: #{tpu_custom_call.1} parent=1 // pred_region
      _
    $region33: #{tpu_custom_call.1} parent=1 // pred_fallthru
      _
    // Predicated region
    $region34: #{tpu_custom_call.1} parent=1 // pred_check
      _
    $region35: #{tpu_custom_call.1} parent=1 // pred_check_branch
      %106 = sbr.rel (0) target = $region37
    $region36: #{tpu_custom_call.1} parent=1 // pred_region
      _
    $region37: #{tpu_custom_call.1} parent=1 // pred_fallthru
      _
    // Predicated region
    $region38: #{tpu_custom_call.1} parent=1 // pred_check
      _
    $region39: #{tpu_custom_call.1} parent=1 // pred_check_branch
      %108 = sbr.rel (0) target = $region41
    $region40: #{tpu_custom_call.1} parent=1 // pred_region
      %110 = dma.done [#allocation3], 256
    $region41: #{tpu_custom_call.1} parent=1 // pred_fallthru
      _
    // Predicated region
    $region42: #{tpu_custom_call.1} parent=1 // pred_check
      _
    $region43: #{tpu_custom_call.1} parent=1 // pred_check_branch
      %112 = sbr.rel (0) target = $region45
    $region44: #{tpu_custom_call.1} parent=1 // pred_region
      %114 = dma.done [#allocation6], 256
    $region45: #{tpu_custom_call.1} parent=1 // pred_fallthru
      _
    // Predicated region
    $region46: #{tpu_custom_call.1} parent=1 // pred_check
      _
    $region47: #{tpu_custom_call.1} parent=1 // pred_check_branch
      %116 = sbr.rel (0) target = $region49
    $region48: #{tpu_custom_call.1} parent=1 // pred_region
      %118 = dma.done [#allocation6], 256
    $region49: #{tpu_custom_call.1} parent=1 // pred_fallthru
      _
    // Predicated region
    $region50: #{tpu_custom_call.1} parent=1 // pred_check
      _
    $region51: #{tpu_custom_call.1} parent=1 // pred_check_branch
      %120 = sbr.rel (0) target = $region53
    $region52: #{tpu_custom_call.1} parent=1 // pred_region
      %122 = dma.done [#allocation9], 512
    $region53: #{tpu_custom_call.1} parent=1 // pred_fallthru
      _
    // Predicated region
    $region54: #{tpu_custom_call.1} parent=1 // pred_check
      _
    $region55: #{tpu_custom_call.1} parent=1 // pred_check_branch
      %124 = sbr.rel (0) target = $region57
    $region56: #{tpu_custom_call.1} parent=1 // pred_region
      %126 = dma.done [#allocation9], 512
    $region57: #{tpu_custom_call.1} parent=1 // pred_fallthru
      _
    // Predicated region
    $region58: #{tpu_custom_call.1} parent=1 // pred_check
      _
    $region59: #{tpu_custom_call.1} parent=1 // pred_check_branch
      %128 = sbr.rel (0) target = $region61
    $region60: #{tpu_custom_call.1} parent=1 // pred_region
      %130 = dma.done [#allocation12], 512
    $region61: #{tpu_custom_call.1} parent=1 // pred_fallthru
      _
    %v131 = vld [vmem:[#allocation2] sm:$0xff]
    %v132 = vld [vmem:[#allocation2 + $0x8] sm:$0xff]
    %v133 = vld [vmem:[#allocation8] sm:$0xff]
    %v134 = vld [vmem:[#allocation8 + $0x8] sm:$0xff]
    %v135 = vld [vmem:[#allocation8 + $0x10] sm:$0xff]
    %v136 = vld [vmem:[#allocation8 + $0x18] sm:$0xff]
    %v137 = vld [vmem:[%s6] sm:$0x1]
    %v139 = vperm.slane %v137, 0
    %vm141 = vcmask 261120
    %v143 = vsel %vm141, %v131, 0
    %v146 = vsel %vm141, %v132, 0
    %148 = vmatpush.msra.mxu0 0.0
    %149 = vmatpush.msra.mxu0 0.0
    %150 = vmatpush.msra.mxu0 0.0
    %151 = vmatpush.msra.mxu0 0.0
    %152 = vmatpush.msra.mxu0 0.0
    %153 = vmatpush.msra.mxu0 0.0
    %154 = vmatpush.msra.mxu0 0.0
    %155 = vmatpush.msra.mxu0 0.0
    %156 = vmatpush.msra.mxu0 0.0
    %157 = vmatpush.msra.mxu0 0.0
    %158 = vmatpush.msra.mxu0 0.0
    %159 = vmatpush.msra.mxu0 0.0
    %160 = vmatpush.msra.mxu0 %v136
    %161 = vmatpush.msra.mxu0 %v135
    %162 = vmatpush.msra.mxu0 %v134
    %163 = vmatpush.msra.mxu0 %v133
    %164 = vmatmul.f32.gmra.mxu0 %v143
    %v165 = vpop.f32.mrf.mxu0
    %v166 = vadd.f32 %v139, %v165
    %167 = vmatmul.f32.gmra.mxu0 %v146
    %v168 = vpop.f32.mrf.mxu0
    %v169 = vadd.f32 %v139, %v168
    %170 = vdwg.mxu0
    %171 = vst.msk [vmem:[#allocation13] sm:$0xff] %vm141, %v166
    %172 = vst.msk [vmem:[#allocation13 + $0x8] sm:$0xff] %vm141, %v169
    %v173 = vld [vmem:[#allocation5] sm:$0xff]
    %v174 = vld [vmem:[#allocation5 + $0x8] sm:$0xff]
    %v175 = vld [vmem:[#allocation10] sm:$0xff]
    %v176 = vld [vmem:[#allocation10 + $0x8] sm:$0xff]
    %v177 = vld [vmem:[#allocation10 + $0x10] sm:$0xff]
    %v178 = vld [vmem:[#allocation10 + $0x18] sm:$0xff]
    %v179 = vld [vmem:[%s7] sm:$0x1]
    %v181 = vperm.slane %v179, 0
    %v184 = vsel %vm141, %v173, 0
    %v187 = vsel %vm141, %v174, 0
    %189 = vmatpush.msra.mxu0 0.0
    %190 = vmatpush.msra.mxu0 0.0
    %191 = vmatpush.msra.mxu0 0.0
    %192 = vmatpush.msra.mxu0 0.0
    %193 = vmatpush.msra.mxu0 0.0
    %194 = vmatpush.msra.mxu0 0.0
    %195 = vmatpush.msra.mxu0 0.0
    %196 = vmatpush.msra.mxu0 0.0
    %197 = vmatpush.msra.mxu0 0.0
    %198 = vmatpush.msra.mxu0 0.0
    %199 = vmatpush.msra.mxu0 0.0
    %200 = vmatpush.msra.mxu0 0.0
    %201 = vmatpush.msra.mxu0 %v178
    %202 = vmatpush.msra.mxu0 %v177
    %203 = vmatpush.msra.mxu0 %v176
    %204 = vmatpush.msra.mxu0 %v175
    %205 = vmatmul.f32.gmra.mxu0 %v184
    %v206 = vpop.f32.mrf.mxu0
    %v207 = vadd.f32 %v181, %v206
    %208 = vmatmul.f32.gmra.mxu0 %v187
    %v209 = vpop.f32.mrf.mxu0
    %v210 = vadd.f32 %v181, %v209
    %211 = vdwg.mxu0
    %212 = vst.msk [vmem:[#allocation14] sm:$0xff] %vm141, %v207
    %213 = vst.msk [vmem:[#allocation14 + $0x8] sm:$0xff] %vm141, %v210
    %v214 = vld [vmem:[#allocation7] sm:$0xff]
    %v215 = vld [vmem:[#allocation7 + $0x8] sm:$0xff]
    %v216 = vld [vmem:[#allocation11] sm:$0xff]
    %v217 = vld [vmem:[#allocation11 + $0x8] sm:$0xff]
    %v218 = vld [vmem:[#allocation11 + $0x10] sm:$0xff]
    %v219 = vld [vmem:[#allocation11 + $0x18] sm:$0xff]
    %v220 = vld [vmem:[%s8] sm:$0x1]
    %v222 = vperm.slane %v220, 0
    %v225 = vsel %vm141, %v214, 0
    %v228 = vsel %vm141, %v215, 0
    %230 = vmatpush.msra.mxu0 0.0
    %231 = vmatpush.msra.mxu0 0.0
    %232 = vmatpush.msra.mxu0 0.0
    %233 = vmatpush.msra.mxu0 0.0
    %234 = vmatpush.msra.mxu0 0.0
    %235 = vmatpush.msra.mxu0 0.0
    %236 = vmatpush.msra.mxu0 0.0
    %237 = vmatpush.msra.mxu0 0.0
    %238 = vmatpush.msra.mxu0 0.0
    %239 = vmatpush.msra.mxu0 0.0
    %240 = vmatpush.msra.mxu0 0.0
    %241 = vmatpush.msra.mxu0 0.0
    %242 = vmatpush.msra.mxu0 %v219
    %243 = vmatpush.msra.mxu0 %v218
    %244 = vmatpush.msra.mxu0 %v217
    %245 = vmatpush.msra.mxu0 %v216
    %246 = vmatmul.f32.gmra.mxu0 %v225
    %v247 = vpop.f32.mrf.mxu0
    %v248 = vadd.f32 %v222, %v247
    %249 = vmatmul.f32.gmra.mxu0 %v228
    %v250 = vpop.f32.mrf.mxu0
    %v251 = vadd.f32 %v222, %v250
    %252 = vdwg.mxu0
    %253 = vst.msk [vmem:[#allocation16] sm:$0xff] %vm141, %v248
    %254 = vst.msk [vmem:[#allocation16 + $0x8] sm:$0xff] %vm141, %v251
    // Predicated region
    $region62: #{tpu_custom_call.1} parent=1 // pred_check
      _
    $region63: #{tpu_custom_call.1} parent=1 // pred_check_branch
      %256 = sbr.rel (0) target = $region65
    $region64: #{tpu_custom_call.1} parent=1 // pred_region
      %258 = vsyncadd [#allocation4], 0
      %s259 = sshll.u32 [#allocation13], 4
      %s260 = int_to_ptr.vmem [resolvable:$true] %s259
      %s261 = sshll.u32 %s9, 4
      %s262 = int_to_ptr.hbm [resolvable:$true] %s261
      %267 = dma.vmem_to_hbm [thread:$0]  %s260, 256, %s262, [#allocation4], 128, 128, 8
    $region65: #{tpu_custom_call.1} parent=1 // pred_fallthru
      _
    // Predicated region
    $region66: #{tpu_custom_call.1} parent=1 // pred_check
      _
    $region67: #{tpu_custom_call.1} parent=1 // pred_check_branch
      %269 = sbr.rel (0) target = $region69
    $region68: #{tpu_custom_call.1} parent=1 // pred_region
      %271 = vsyncadd [#allocation15], 0
      %s272 = sshll.u32 [#allocation14], 4
      %s273 = int_to_ptr.vmem [resolvable:$true] %s272
      %s274 = sshll.u32 %s10, 4
      %s275 = int_to_ptr.hbm [resolvable:$true] %s274
      %280 = dma.vmem_to_hbm [thread:$0]  %s273, 256, %s275, [#allocation15], 128, 128, 8
    $region69: #{tpu_custom_call.1} parent=1 // pred_fallthru
      _
    // Predicated region
    $region70: #{tpu_custom_call.1} parent=1 // pred_check
      _
    $region71: #{tpu_custom_call.1} parent=1 // pred_check_branch
      %282 = sbr.rel (0) target = $region73
    $region72: #{tpu_custom_call.1} parent=1 // pred_region
      %284 = vsyncadd [#allocation15], 0
      %s285 = sshll.u32 [#allocation16], 4
      %s286 = int_to_ptr.vmem [resolvable:$true] %s285
      %s287 = sshll.u32 %s11, 4
      %s288 = int_to_ptr.hbm [resolvable:$true] %s287
      %293 = dma.vmem_to_hbm [thread:$0]  %s286, 256, %s288, [#allocation15], 128, 128, 8
    $region73: #{tpu_custom_call.1} parent=1 // pred_fallthru
      _
    // Predicated region
    $region74: #{tpu_custom_call.1} parent=1 // pred_check
      _
    $region75: #{tpu_custom_call.1} parent=1 // pred_check_branch
      %295 = sbr.rel (0) target = $region77
    $region76: #{tpu_custom_call.1} parent=1 // pred_region
      %297 = dma.done [#allocation4], 256
    $region77: #{tpu_custom_call.1} parent=1 // pred_fallthru
      _
    // Predicated region
    $region78: #{tpu_custom_call.1} parent=1 // pred_check
      _
    $region79: #{tpu_custom_call.1} parent=1 // pred_check_branch
      %299 = sbr.rel (0) target = $region81
    $region80: #{tpu_custom_call.1} parent=1 // pred_region
      %301 = dma.done [#allocation15], 256
    $region81: #{tpu_custom_call.1} parent=1 // pred_fallthru
      _
    // Predicated region
    $region82: #{tpu_custom_call.1} parent=1 // pred_check
      _
    $region83: #{tpu_custom_call.1} parent=1 // pred_check_branch
      %303 = sbr.rel (0) target = $region85
    $region84: #{tpu_custom_call.1} parent=1 // pred_region
      %305 = dma.done [#allocation15], 256
    $region85: #{tpu_custom_call.1} parent=1 // pred_fallthru
      _
    %306 = vsyncpa [#allocation3], 1
    %307 = vsyncpa [#allocation6], 1
    %308 = vsyncpa [#allocation9], 1
    %309 = vsyncpa [#allocation12], 1
    %310 = vsyncpa [#allocation4], 1
    %311 = vsyncpa [#allocation15], 1

</llo_original>
